<compile_context>
chip_gen: v6e
topology: v6e:2x2x1
jax: 0.10.0
libtpu: 0.0.40
codegen_flags: <defaults>
</compile_context>

<pallas_src>
import functools

import jax
import jax.numpy as jnp
from jax.experimental import pallas as pl
from jax.experimental.pallas import tpu as pltpu

LANES = 128


def _round_up(a, b):
    return (a + b - 1) // b * b


def conv_relu_maxpool_kernel(patch_ref, w_ref, b_ref, out_ref):
    # patch_ref: (4, TM, CKK) bf16 -- one im2col slab per 2x2 pool-window position
    # w_ref:     (CKK, 128)   bf16 -- conv weights, out-channels padded to 128 lanes
    # b_ref:     (1, 128)     f32  -- conv bias (padded)
    # out_ref:   (TM, 128)    f32  -- pooled + ReLU'd output tile (lane-dense)
    w = w_ref[...]  # hoisted: loaded once, reused by all 4 dots
    z0 = jnp.dot(patch_ref[0], w, preferred_element_type=jnp.float32)
    z1 = jnp.dot(patch_ref[1], w, preferred_element_type=jnp.float32)
    z2 = jnp.dot(patch_ref[2], w, preferred_element_type=jnp.float32)
    z3 = jnp.dot(patch_ref[3], w, preferred_element_type=jnp.float32)
    # MaxPool2d(2,2): elementwise max over the 4 window positions (VPU).
    m = jnp.maximum(jnp.maximum(z0, z1), jnp.maximum(z2, z3))
    # bias-add and ReLU commute with the max -> apply once on the pooled tile.
    out_ref[...] = jnp.maximum(m + b_ref[...], 0.0)


def _im2col_pool_ordered(x, K):
    """Pure data movement: (N,C,H,W) -> (4, N*Hp*Wp, C*K*K), pool-position major."""
    N, C, H, W = x.shape
    Ho, Wo = H - K + 1, W - K + 1
    Hp, Wp = Ho // 2, Wo // 2
    cols = jnp.stack(
        [x[:, :, ky:ky + Ho, kx:kx + Wo] for ky in range(K) for kx in range(K)],
        axis=-1)                                        # (N, C, Ho, Wo, K*K)
    cols = jnp.transpose(cols, (0, 2, 3, 1, 4))         # (N, Ho, Wo, C, K*K)
    cols = cols.reshape(N, Ho, Wo, C * K * K)           # feature order (c, ky, kx)
    cols = cols[:, :2 * Hp, :2 * Wp, :]                 # MaxPool2d(2,2) drops odd tail
    cols = cols.reshape(N, Hp, 2, Wp, 2, C * K * K)
    cols = jnp.transpose(cols, (2, 4, 0, 1, 3, 5))      # (dy, dx, N, Hp, Wp, CKK)
    return cols.reshape(4, N * Hp * Wp, C * K * K), (Hp, Wp)


@functools.partial(jax.jit, static_argnames=("kernel_size", "tm"))
def cnet_forward(x, weight, bias, kernel_size=5, tm=512):
    """Equivalent of CNet.forward: Conv2d(valid) -> ReLU -> MaxPool2d(2,2)."""
    N, C, H, W = x.shape
    O = weight.shape[0]
    K = kernel_size
    CKK = C * K * K
    O_pad = _round_up(O, LANES)

    patches, (Hp, Wp) = _im2col_pool_ordered(x, K)      # (4, Mp, CKK)
    Mp = N * Hp * Wp

    # Row tile: big enough to amortize per-step overhead, capped so the bf16
    # working set (4 slabs x TM x CKK x 2B, double-buffered) stays well inside
    # v7x's 64 MiB VMEM (and v5e/v6e's default 16/32 MiB scoped limits).
    TM = min(tm, _round_up(Mp, 16))
    Mp_pad = _round_up(Mp, TM)
    if Mp_pad != Mp:
        patches = jnp.pad(patches, ((0, 0), (0, Mp_pad - Mp), (0, 0)))

    # bf16 inputs to the MXU; accumulation stays f32 inside the kernel.
    patches = patches.astype(jnp.bfloat16)
    w_mat = weight.reshape(O, CKK).T.astype(jnp.bfloat16)       # (CKK, O)
    w_mat = jnp.pad(w_mat, ((0, 0), (0, O_pad - O)))            # lane-dense output
    b_mat = jnp.pad(bias.astype(jnp.float32), (0, O_pad - O)).reshape(1, O_pad)

    pooled = pl.pallas_call(
        conv_relu_maxpool_kernel,
        out_shape=jax.ShapeDtypeStruct((Mp_pad, O_pad), jnp.float32),
        grid_spec=pltpu.PrefetchScalarGridSpec(
            num_scalar_prefetch=0,
            grid=(Mp_pad // TM,),                         # row tiles only
            in_specs=[
                pl.BlockSpec((4, TM, CKK), lambda i: (0, i, 0)),
                pl.BlockSpec((CKK, O_pad), lambda i: (0, 0)),
                pl.BlockSpec((1, O_pad), lambda i: (0, 0)),
            ],
            out_specs=pl.BlockSpec((TM, O_pad), lambda i: (i, 0)),
        ),
        compiler_params=pltpu.CompilerParams(
            dimension_semantics=("parallel",)),           # shards across v7x's 2 TCs
    )(patches, w_mat, b_mat)

    # pooled is the natural NHWC-major (rows x channel-lanes) TPU layout; the
    # final transpose exists only to match the PyTorch module's NCHW output.
    out = pooled[:Mp, :O].reshape(N, Hp, Wp, O)
    return jnp.transpose(out, (0, 3, 1, 2))


def _reference(x, weight, bias):
    y = jax.lax.conv_general_dilated(
        x, weight, window_strides=(1, 1), padding="VALID",
        dimension_numbers=("NCHW", "OIHW", "NCHW"))
    y = y + bias[None, :, None, None]
    y = jnp.maximum(y, 0.0)
    y = jax.lax.reduce_window(
        y, -jnp.inf, jax.lax.max,
        window_dimensions=(1, 1, 2, 2), window_strides=(1, 1, 2, 2),
        padding="VALID")
    return y


if __name__ == "__main__":
    # Small shapes consistent with CNet(inputs=4, outputs=8, kernel_size=5)
    N, C, H, W = 2, 4, 16, 16
    O, K = 8, 5

    key = jax.random.PRNGKey(0)
    kw, kb, kx = jax.random.split(key, 3)
    fan_in = C * K * K
    bound = (1.0 / fan_in) ** 0.5
    weight = jax.random.uniform(kw, (O, C, K, K), jnp.float32, -bound, bound)
    bias = jax.random.uniform(kb, (O,), jnp.float32, -bound, bound)
    x = jax.random.normal(kx, (N, C, H, W), dtype=jnp.float32)

    out = cnet_forward(x, weight, bias, kernel_size=K)
    out = jax.block_until_ready(out)

    ref = jax.block_until_ready(_reference(x, weight, bias))
    assert out.shape == (N, O, (H - K + 1) // 2, (W - K + 1) // 2), out.shape
    # bf16 MXU inputs vs f32 XLA reference -> slightly looser tolerance.
    assert jnp.allclose(out, ref, rtol=2e-2, atol=5e-2), "mismatch vs JAX reference"

    print("KERNEL_OK")
</pallas_src>

<mosaic_0001>
module attributes {stable_mosaic.version = 11 : i64} {
  func.func @conv_relu_maxpool_kernel(%arg0: i32, %arg1: memref<4x80x100xbf16, #tpu.memory_space<vmem>>, %arg2: memref<100x128xbf16, #tpu.memory_space<vmem>>, %arg3: memref<1x128xf32, #tpu.memory_space<vmem>>, %arg4: memref<80x128xf32, #tpu.memory_space<vmem>>) attributes {dimension_semantics = [#tpu.dimension_semantics<parallel>], iteration_bounds = array<i64: 1>, scalar_prefetch = 0 : i64, scratch_operands = 0 : i64, tpu.core_type = #tpu.core_type<tc>, window_params = [{transform_indices = @transform_0, window_bounds = array<i64: 4, 80, 100>}, {pipeline_mode = #tpu.pipeline_mode<synchronous>, transform_indices = @transform_1, window_bounds = array<i64: 100, 128>}, {pipeline_mode = #tpu.pipeline_mode<synchronous>, transform_indices = @transform_2, window_bounds = array<i64: 1, 128>}, {transform_indices = @transform_3, window_bounds = array<i64: 80, 128>}]} {
    %c0 = arith.constant 0 : index
    %c0_0 = arith.constant 0 : index
    %0 = vector.load %arg2[%c0, %c0_0] : memref<100x128xbf16, #tpu.memory_space<vmem>>, vector<100x128xbf16>
    %c0_1 = arith.constant 0 : index
    %c0_2 = arith.constant 0 : index
    %c0_3 = arith.constant 0 : index
    %1 = vector.load %arg1[%c0_1, %c0_2, %c0_3] : memref<4x80x100xbf16, #tpu.memory_space<vmem>>, vector<1x80x100xbf16>
    %2 = vector.shape_cast %1 : vector<1x80x100xbf16> to vector<80x100xbf16>
    %cst = arith.constant dense<0.000000e+00> : vector<80x128xf32>
    %3 = tpu.matmul %2, %0, %cst {dimension_numbers = #tpu.dot_dimension_numbers<[1], [0], [0], [1], [0, 0, 1, 1], [], []>} : vector<80x100xbf16>, vector<100x128xbf16>, vector<80x128xf32> -> vector<80x128xf32>
    %c1 = arith.constant 1 : index
    %c0_4 = arith.constant 0 : index
    %c0_5 = arith.constant 0 : index
    %4 = vector.load %arg1[%c1, %c0_4, %c0_5] : memref<4x80x100xbf16, #tpu.memory_space<vmem>>, vector<1x80x100xbf16>
    %5 = vector.shape_cast %4 : vector<1x80x100xbf16> to vector<80x100xbf16>
    %cst_6 = arith.constant dense<0.000000e+00> : vector<80x128xf32>
    %6 = tpu.matmul %5, %0, %cst_6 {dimension_numbers = #tpu.dot_dimension_numbers<[1], [0], [0], [1], [0, 0, 1, 1], [], []>} : vector<80x100xbf16>, vector<100x128xbf16>, vector<80x128xf32> -> vector<80x128xf32>
    %c2 = arith.constant 2 : index
    %c0_7 = arith.constant 0 : index
    %c0_8 = arith.constant 0 : index
    %7 = vector.load %arg1[%c2, %c0_7, %c0_8] : memref<4x80x100xbf16, #tpu.memory_space<vmem>>, vector<1x80x100xbf16>
    %8 = vector.shape_cast %7 : vector<1x80x100xbf16> to vector<80x100xbf16>
    %cst_9 = arith.constant dense<0.000000e+00> : vector<80x128xf32>
    %9 = tpu.matmul %8, %0, %cst_9 {dimension_numbers = #tpu.dot_dimension_numbers<[1], [0], [0], [1], [0, 0, 1, 1], [], []>} : vector<80x100xbf16>, vector<100x128xbf16>, vector<80x128xf32> -> vector<80x128xf32>
    %c3 = arith.constant 3 : index
    %c0_10 = arith.constant 0 : index
    %c0_11 = arith.constant 0 : index
    %10 = vector.load %arg1[%c3, %c0_10, %c0_11] : memref<4x80x100xbf16, #tpu.memory_space<vmem>>, vector<1x80x100xbf16>
    %11 = vector.shape_cast %10 : vector<1x80x100xbf16> to vector<80x100xbf16>
    %cst_12 = arith.constant dense<0.000000e+00> : vector<80x128xf32>
    %12 = tpu.matmul %11, %0, %cst_12 {dimension_numbers = #tpu.dot_dimension_numbers<[1], [0], [0], [1], [0, 0, 1, 1], [], []>} : vector<80x100xbf16>, vector<100x128xbf16>, vector<80x128xf32> -> vector<80x128xf32>
    %13 = arith.maximumf %3, %6 : vector<80x128xf32>
    %14 = arith.maximumf %9, %12 : vector<80x128xf32>
    %15 = arith.maximumf %13, %14 : vector<80x128xf32>
    %c0_13 = arith.constant 0 : index
    %c0_14 = arith.constant 0 : index
    %16 = vector.load %arg3[%c0_13, %c0_14] : memref<1x128xf32, #tpu.memory_space<vmem>>, vector<1x128xf32>
    %17 = vector.broadcast %16 : vector<1x128xf32> to vector<80x128xf32>
    %18 = arith.addf %15, %17 : vector<80x128xf32>
    %cst_15 = arith.constant 0.000000e+00 : f32
    %19 = vector.broadcast %cst_15 : f32 to vector<80x128xf32>
    %20 = arith.maximumf %18, %19 : vector<80x128xf32>
    %c0_16 = arith.constant 0 : index
    %c0_17 = arith.constant 0 : index
    %21 = vector.load %arg4[%c0_16, %c0_17] : memref<80x128xf32, #tpu.memory_space<vmem>>, vector<80x128xf32>
    tpu.vector_store %arg4[%c0_16, %c0_17], %20 {strides = array<i32>} : memref<80x128xf32, #tpu.memory_space<vmem>>, vector<80x128xf32>,
    return
  }
  func.func @transform_0(%arg0: i32) -> (i32, i32, i32) {
    %c0_i32 = arith.constant 0 : i32
    %c0_i32_0 = arith.constant 0 : i32
    %c0_i32_1 = arith.constant 0 : i32
    return %c0_i32, %arg0, %c0_i32_0 : i32, i32, i32
  }
  func.func @transform_1(%arg0: i32) -> (i32, i32) {
    %c0_i32 = arith.constant 0 : i32
    %c0_i32_0 = arith.constant 0 : i32
    %c0_i32_1 = arith.constant 0 : i32
    return %c0_i32, %c0_i32_0 : i32, i32
  }
  func.func @transform_2(%arg0: i32) -> (i32, i32) {
    %c0_i32 = arith.constant 0 : i32
    %c0_i32_0 = arith.constant 0 : i32
    %c0_i32_1 = arith.constant 0 : i32
    return %c0_i32, %c0_i32_0 : i32, i32
  }
  func.func @transform_3(%arg0: i32) -> (i32, i32) {
    %c0_i32 = arith.constant 0 : i32
    %c0_i32_0 = arith.constant 0 : i32
    return %arg0, %c0_i32 : i32, i32
  }
}

</mosaic_0001>

<llo_original>
// kernel: cnet_forward.1
$region0: #{cnet_forward.1}
  #allocation0 [shape = 'u32[]', space=smem, size = 0x4, offset = 0x4, fixed_abs, tag = 'smem constant byte address 0x4 - core index']
  #allocation1 [shape = 'u32[144,128]{1,0:T(1,128)}', space=vmem, size = 0x12000, scoped, tag = 'internal scratch']
  %s0 = inlined_call_operand.vmem [shape: bf16[4,80,100], index: 0, kind: input, shape index: {}]
  %s1 = inlined_call_operand.vmem [shape: bf16[100,128], index: 1, kind: input, shape index: {}]
  %s2 = inlined_call_operand.vmem [shape: f32[1,128], index: 2, kind: input, shape index: {}]
  %s3 = inlined_call_operand.vmem [shape: f32[80,128], index: 3, kind: output, shape index: {}]
  %s4 = sld [smem:[#allocation0]]
  $region22: #{cnet_forward.1} parent=0
    _
  %s6 = ssub.s32 1, %s4
  %s7 = scalar_select 0, %s6, %s4
  // Predicated region
  $region2: #{cnet_forward.1} parent=0 // pred_check
    _
  $region3: #{cnet_forward.1} parent=0 // pred_check_branch
    %9 = sbr.rel (0) target = $region5
  $region4: #{cnet_forward.1} parent=0 // pred_region
    _
  $region5: #{cnet_forward.1} parent=0 // pred_fallthru
    _
  // Predicated region
  $region6: #{cnet_forward.1} parent=0 // pred_check
    _
  $region7: #{cnet_forward.1} parent=0 // pred_check_branch
    %11 = sbr.rel (0) target = $region9
  $region8: #{cnet_forward.1} parent=0 // pred_region
    _
  $region9: #{cnet_forward.1} parent=0 // pred_fallthru
    _
  // Predicated region
  $region10: #{cnet_forward.1} parent=0 // pred_check
    _
  $region11: #{cnet_forward.1} parent=0 // pred_check_branch
    %13 = sbr.rel (0) target = $region13
  $region12: #{cnet_forward.1} parent=0 // pred_region
    _
  $region13: #{cnet_forward.1} parent=0 // pred_fallthru
    _
  %v15 = vld [vmem:[%s1] sm:$0xf]
  %v16 = vld [vmem:[%s1 + $0x4] sm:$0xf]
  %v17 = vld [vmem:[%s1 + $0x8] sm:$0xf]
  %v18 = vld [vmem:[%s1 + $0xc] sm:$0xf]
  %v19 = vld [vmem:[%s1 + $0x10] sm:$0xf]
  %v20 = vld [vmem:[%s1 + $0x14] sm:$0xf]
  %v21 = vld [vmem:[%s1 + $0x18] sm:$0xf]
  %v22 = vld [vmem:[%s1 + $0x1c] sm:$0xf]
  %v23 = vld [vmem:[%s1 + $0x20] sm:$0xf]
  %v24 = vld [vmem:[%s1 + $0x24] sm:$0xf]
  %v25 = vld [vmem:[%s1 + $0x28] sm:$0xf]
  %v26 = vld [vmem:[%s1 + $0x2c] sm:$0xf]
  %v27 = vld [vmem:[%s1 + $0x30] sm:$0x3]
  %v28 = vld [vmem:[%s0] sm:$0xf]
  %v29 = vld [vmem:[%s0 + $0x4] sm:$0xf]
  %v30 = vld [vmem:[%s0 + $0x8] sm:$0xf]
  %v31 = vld [vmem:[%s0 + $0xc] sm:$0xf]
  %v32 = vld [vmem:[%s0 + $0x10] sm:$0xf]
  %v33 = vld [vmem:[%s0 + $0x14] sm:$0xf]
  %v34 = vld [vmem:[%s0 + $0x18] sm:$0xf]
  %v35 = vld [vmem:[%s0 + $0x1c] sm:$0xf]
  %v36 = vld [vmem:[%s0 + $0x20] sm:$0xf]
  %v37 = vld [vmem:[%s0 + $0x24] sm:$0xf]
  %v48 = vunpack.c.l.b16 %v28
  %v49 = vunpack.c.l.b16 %v29
  %v50 = vunpack.c.l.b16 %v30
  %v51 = vunpack.c.l.b16 %v31
  %v52 = vunpack.c.l.b16 %v32
  %v53 = vunpack.c.l.b16 %v33
  %v54 = vunpack.c.l.b16 %v34
  %v55 = vunpack.c.l.b16 %v35
  %v56 = vunpack.c.l.b16 %v36
  %v57 = vunpack.c.l.b16 %v37
  %v58 = vpack.c.b16 %v49, %v48
  %v59 = vpack.c.b16 %v51, %v50
  %v60 = vpack.c.b16 %v53, %v52
  %v61 = vpack.c.b16 %v55, %v54
  %v62 = vpack.c.b16 %v57, %v56
  %v76 = vunpack.c.l.b16 %v15
  %v77 = vunpack.c.l.b16 %v16
  %v78 = vunpack.c.l.b16 %v17
  %v79 = vunpack.c.l.b16 %v18
  %v80 = vunpack.c.l.b16 %v19
  %v81 = vunpack.c.l.b16 %v20
  %v82 = vunpack.c.l.b16 %v21
  %v83 = vunpack.c.l.b16 %v22
  %v84 = vunpack.c.l.b16 %v23
  %v85 = vunpack.c.l.b16 %v24
  %v86 = vunpack.c.l.b16 %v25
  %v87 = vunpack.c.l.b16 %v26
  %v88 = vunpack.c.l.b16 %v27
  %v89 = vpack.c.b16 %v77, %v76
  %v90 = vpack.c.b16 %v79, %v78
  %v91 = vpack.c.b16 %v81, %v80
  %v92 = vpack.c.b16 %v83, %v82
  %v93 = vpack.c.b16 %v85, %v84
  %v94 = vpack.c.b16 %v87, %v86
  %v95 = vpack.c.b16 %v88, %v88
  %vm102 = vcmask 818176
  %v104 = vsel %vm102, %v58, 0
  %v107 = vsel %vm102, %v59, 0
  %v110 = vsel %vm102, %v60, 0
  %v113 = vsel %vm102, %v61, 0
  %v116 = vsel %vm102, %v62, 0
  %vm118 = vcmask 1041408
  %v120 = vsel %vm118, %v95, 0
  %122 = vmatprep.subr.bf16.mxu0 0
  %123 = vmatpush1.bf16.msra.mxu0 0
  %124 = vmatprep.subr.bf16.mxu0 0
  %125 = vmatpush1.bf16.msra.mxu0 %v120
  %126 = vmatprep.subr.bf16.mxu0 0
  %127 = vmatpush1.bf16.msra.mxu0 %v94
  %128 = vmatprep.subr.bf16.mxu0 0
  %129 = vmatpush1.bf16.msra.mxu0 %v93
  %130 = vmatprep.subr.bf16.mxu0 0
  %131 = vmatpush1.bf16.msra.mxu0 %v92
  %132 = vmatprep.subr.bf16.mxu0 0
  %133 = vmatpush1.bf16.msra.mxu0 %v91
  %134 = vmatprep.subr.bf16.mxu0 0
  %135 = vmatpush1.bf16.msra.mxu0 %v90
  %136 = vmatprep.subr.bf16.mxu0 0
  %137 = vmatpush1.bf16.msra.mxu0 %v89
  %138 = vmatprep.subr.bf16.mxu0 0
  %139 = vmatpush2.bf16.msra.mxu0 0
  %140 = vmatprep.subr.bf16.mxu0 0
  %141 = vmatpush2.bf16.msra.mxu0 0
  %142 = vmatprep.subr.bf16.mxu0 0
  %143 = vmatpush2.bf16.msra.mxu0 0
  %144 = vmatprep.subr.bf16.mxu0 0
  %145 = vmatpush2.bf16.msra.mxu0 0
  %146 = vmatprep.subr.bf16.mxu0 0
  %147 = vmatpush2.bf16.msra.mxu0 0
  %148 = vmatprep.subr.bf16.mxu0 0
  %149 = vmatpush2.bf16.msra.mxu0 0
  %150 = vmatprep.subr.bf16.mxu0 0
  %151 = vmatpush2.bf16.msra.mxu0 0
  %152 = vmatprep.subr.bf16.mxu0 0
  %153 = vmatpush2.bf16.msra.mxu0 0
  %154 = vmatprep.mubr.bf16.mxu0 0
  %155 = vmatmul.mubr.bf16.gmra.mxu0 %v104
  %v156 = vpop.f32.mrf.mxu0
  %v157 = vadd.f32 0.0, %v156
  %v158 = vpop.f32.mrf.mxu0
  %v159 = vpop.f32.mrf.mxu0
  %v160 = vadd.f32 0.0, %v159
  %v161 = vpop.f32.mrf.mxu0
  %162 = vmatprep.mubr.bf16.mxu0 0
  %163 = vmatmul.mubr.bf16.gmra.mxu0 %v107
  %v164 = vpop.f32.mrf.mxu0
  %v165 = vadd.f32 0.0, %v164
  %v166 = vpop.f32.mrf.mxu0
  %v167 = vpop.f32.mrf.mxu0
  %v168 = vadd.f32 0.0, %v167
  %v169 = vpop.f32.mrf.mxu0
  %170 = vmatprep.mubr.bf16.mxu0 0
  %171 = vmatmul.mubr.bf16.gmra.mxu0 %v110
  %v172 = vpop.f32.mrf.mxu0
  %v173 = vadd.f32 0.0, %v172
  %v174 = vpop.f32.mrf.mxu0
  %v175 = vpop.f32.mrf.mxu0
  %v176 = vadd.f32 0.0, %v175
  %v177 = vpop.f32.mrf.mxu0
  %178 = vmatprep.mubr.bf16.mxu0 0
  %179 = vmatmul.mubr.bf16.gmra.mxu0 %v113
  %v180 = vpop.f32.mrf.mxu0
  %v181 = vadd.f32 0.0, %v180
  %v182 = vpop.f32.mrf.mxu0
  %v183 = vpop.f32.mrf.mxu0
  %v184 = vadd.f32 0.0, %v183
  %v185 = vpop.f32.mrf.mxu0
  %186 = vmatprep.mubr.bf16.mxu0 0
  %187 = vmatmul.mubr.bf16.gmra.mxu0 %v116
  %v188 = vpop.f32.mrf.mxu0
  %v189 = vadd.f32 0.0, %v188
  %v190 = vpop.f32.mrf.mxu0
  %v191 = vpop.f32.mrf.mxu0
  %v192 = vadd.f32 0.0, %v191
  %v193 = vpop.f32.mrf.mxu0
  %194 = vdwg.mxu0
  %s195 = scalar_lea.vmem %s0, 40
  %v196 = vld [vmem:[%s195] sm:$0xf]
  %v197 = vld [vmem:[%s195 + $0x4] sm:$0xf]
  %v198 = vld [vmem:[%s195 + $0x8] sm:$0xf]
  %v199 = vld [vmem:[%s195 + $0xc] sm:$0xf]
  %v200 = vld [vmem:[%s195 + $0x10] sm:$0xf]
  %v201 = vld [vmem:[%s195 + $0x14] sm:$0xf]
  %v202 = vld [vmem:[%s195 + $0x18] sm:$0xf]
  %v203 = vld [vmem:[%s195 + $0x1c] sm:$0xf]
  %v204 = vld [vmem:[%s195 + $0x20] sm:$0xf]
  %v205 = vld [vmem:[%s195 + $0x24] sm:$0xf]
  %v216 = vunpack.c.l.b16 %v196
  %v217 = vunpack.c.l.b16 %v197
  %v218 = vunpack.c.l.b16 %v198
  %v219 = vunpack.c.l.b16 %v199
  %v220 = vunpack.c.l.b16 %v200
  %v221 = vunpack.c.l.b16 %v201
  %v222 = vunpack.c.l.b16 %v202
  %v223 = vunpack.c.l.b16 %v203
  %v224 = vunpack.c.l.b16 %v204
  %v225 = vunpack.c.l.b16 %v205
  %v226 = vpack.c.b16 %v217, %v216
  %v227 = vpack.c.b16 %v219, %v218
  %v228 = vpack.c.b16 %v221, %v220
  %v229 = vpack.c.b16 %v223, %v222
  %v230 = vpack.c.b16 %v225, %v224
  %v232 = vsel %vm102, %v226, 0
  %v235 = vsel %vm102, %v227, 0
  %v238 = vsel %vm102, %v228, 0
  %v241 = vsel %vm102, %v229, 0
  %v244 = vsel %vm102, %v230, 0
  %246 = vmatprep.subr.bf16.mxu0 0
  %247 = vmatpush1.bf16.msra.mxu0 0
  %248 = vmatprep.subr.bf16.mxu0 0
  %249 = vmatpush1.bf16.msra.mxu0 %v120
  %250 = vmatprep.subr.bf16.mxu0 0
  %251 = vmatpush1.bf16.msra.mxu0 %v94
  %252 = vmatprep.subr.bf16.mxu0 0
  %253 = vmatpush1.bf16.msra.mxu0 %v93
  %254 = vmatprep.subr.bf16.mxu0 0
  %255 = vmatpush1.bf16.msra.mxu0 %v92
  %256 = vmatprep.subr.bf16.mxu0 0
  %257 = vmatpush1.bf16.msra.mxu0 %v91
  %258 = vmatprep.subr.bf16.mxu0 0
  %259 = vmatpush1.bf16.msra.mxu0 %v90
  %260 = vmatprep.subr.bf16.mxu0 0
  %261 = vmatpush1.bf16.msra.mxu0 %v89
  %262 = vmatprep.subr.bf16.mxu0 0
  %263 = vmatpush2.bf16.msra.mxu0 0
  %264 = vmatprep.subr.bf16.mxu0 0
  %265 = vmatpush2.bf16.msra.mxu0 0
  %266 = vmatprep.subr.bf16.mxu0 0
  %267 = vmatpush2.bf16.msra.mxu0 0
  %268 = vmatprep.subr.bf16.mxu0 0
  %269 = vmatpush2.bf16.msra.mxu0 0
  %270 = vmatprep.subr.bf16.mxu0 0
  %271 = vmatpush2.bf16.msra.mxu0 0
  %272 = vmatprep.subr.bf16.mxu0 0
  %273 = vmatpush2.bf16.msra.mxu0 0
  %274 = vmatprep.subr.bf16.mxu0 0
  %275 = vmatpush2.bf16.msra.mxu0 0
  %276 = vmatprep.subr.bf16.mxu0 0
  %277 = vmatpush2.bf16.msra.mxu0 0
  %278 = vmatprep.mubr.bf16.mxu0 0
  %279 = vmatmul.mubr.bf16.gmra.mxu0 %v232
  %v280 = vpop.f32.mrf.mxu0
  %v281 = vadd.f32 0.0, %v280
  %v282 = vpop.f32.mrf.mxu0
  %v283 = vpop.f32.mrf.mxu0
  %v284 = vadd.f32 0.0, %v283
  %v285 = vpop.f32.mrf.mxu0
  %286 = vmatprep.mubr.bf16.mxu0 0
  %287 = vmatmul.mubr.bf16.gmra.mxu0 %v235
  %v288 = vpop.f32.mrf.mxu0
  %v289 = vadd.f32 0.0, %v288
  %v290 = vpop.f32.mrf.mxu0
  %v291 = vpop.f32.mrf.mxu0
  %v292 = vadd.f32 0.0, %v291
  %v293 = vpop.f32.mrf.mxu0
  %294 = vmatprep.mubr.bf16.mxu0 0
  %295 = vmatmul.mubr.bf16.gmra.mxu0 %v238
  %v296 = vpop.f32.mrf.mxu0
  %v297 = vadd.f32 0.0, %v296
  %v298 = vpop.f32.mrf.mxu0
  %v299 = vpop.f32.mrf.mxu0
  %v300 = vadd.f32 0.0, %v299
  %v301 = vpop.f32.mrf.mxu0
  %302 = vmatprep.mubr.bf16.mxu0 0
  %303 = vmatmul.mubr.bf16.gmra.mxu0 %v241
  %v304 = vpop.f32.mrf.mxu0
  %v305 = vadd.f32 0.0, %v304
  %v306 = vpop.f32.mrf.mxu0
  %v307 = vpop.f32.mrf.mxu0
  %v308 = vadd.f32 0.0, %v307
  %v309 = vpop.f32.mrf.mxu0
  %310 = vmatprep.mubr.bf16.mxu0 0
  %311 = vmatmul.mubr.bf16.gmra.mxu0 %v244
  %v312 = vpop.f32.mrf.mxu0
  %v313 = vadd.f32 0.0, %v312
  %v314 = vpop.f32.mrf.mxu0
  %v315 = vpop.f32.mrf.mxu0
  %v316 = vadd.f32 0.0, %v315
  %v317 = vpop.f32.mrf.mxu0
  %318 = vdwg.mxu0
  %s319 = scalar_lea.vmem %s0, 80
  %v320 = vld [vmem:[%s319] sm:$0xf]
  %v321 = vld [vmem:[%s319 + $0x4] sm:$0xf]
  %v322 = vld [vmem:[%s319 + $0x8] sm:$0xf]
  %v323 = vld [vmem:[%s319 + $0xc] sm:$0xf]
  %v324 = vld [vmem:[%s319 + $0x10] sm:$0xf]
  %v325 = vld [vmem:[%s319 + $0x14] sm:$0xf]
  %v326 = vld [vmem:[%s319 + $0x18] sm:$0xf]
  %v327 = vld [vmem:[%s319 + $0x1c] sm:$0xf]
  %v328 = vld [vmem:[%s319 + $0x20] sm:$0xf]
  %v329 = vld [vmem:[%s319 + $0x24] sm:$0xf]
  %v340 = vunpack.c.l.b16 %v320
  %v341 = vunpack.c.l.b16 %v321
  %v342 = vunpack.c.l.b16 %v322
  %v343 = vunpack.c.l.b16 %v323
  %v344 = vunpack.c.l.b16 %v324
  %v345 = vunpack.c.l.b16 %v325
  %v346 = vunpack.c.l.b16 %v326
  %v347 = vunpack.c.l.b16 %v327
  %v348 = vunpack.c.l.b16 %v328
  %v349 = vunpack.c.l.b16 %v329
  %v350 = vpack.c.b16 %v341, %v340
  %v351 = vpack.c.b16 %v343, %v342
  %v352 = vpack.c.b16 %v345, %v344
  %v353 = vpack.c.b16 %v347, %v346
  %v354 = vpack.c.b16 %v349, %v348
  %v356 = vsel %vm102, %v350, 0
  %v359 = vsel %vm102, %v351, 0
  %v362 = vsel %vm102, %v352, 0
  %v365 = vsel %vm102, %v353, 0
  %v368 = vsel %vm102, %v354, 0
  %370 = vmatprep.subr.bf16.mxu0 0
  %371 = vmatpush1.bf16.msra.mxu0 0
  %372 = vmatprep.subr.bf16.mxu0 0
  %373 = vmatpush1.bf16.msra.mxu0 %v120
  %374 = vmatprep.subr.bf16.mxu0 0
  %375 = vmatpush1.bf16.msra.mxu0 %v94
  %376 = vmatprep.subr.bf16.mxu0 0
  %377 = vmatpush1.bf16.msra.mxu0 %v93
  %378 = vmatprep.subr.bf16.mxu0 0
  %379 = vmatpush1.bf16.msra.mxu0 %v92
  %380 = vmatprep.subr.bf16.mxu0 0
  %381 = vmatpush1.bf16.msra.mxu0 %v91
  %382 = vmatprep.subr.bf16.mxu0 0
  %383 = vmatpush1.bf16.msra.mxu0 %v90
  %384 = vmatprep.subr.bf16.mxu0 0
  %385 = vmatpush1.bf16.msra.mxu0 %v89
  %386 = vmatprep.subr.bf16.mxu0 0
  %387 = vmatpush2.bf16.msra.mxu0 0
  %388 = vmatprep.subr.bf16.mxu0 0
  %389 = vmatpush2.bf16.msra.mxu0 0
  %390 = vmatprep.subr.bf16.mxu0 0
  %391 = vmatpush2.bf16.msra.mxu0 0
  %392 = vmatprep.subr.bf16.mxu0 0
  %393 = vmatpush2.bf16.msra.mxu0 0
  %394 = vmatprep.subr.bf16.mxu0 0
  %395 = vmatpush2.bf16.msra.mxu0 0
  %396 = vmatprep.subr.bf16.mxu0 0
  %397 = vmatpush2.bf16.msra.mxu0 0
  %398 = vmatprep.subr.bf16.mxu0 0
  %399 = vmatpush2.bf16.msra.mxu0 0
  %400 = vmatprep.subr.bf16.mxu0 0
  %401 = vmatpush2.bf16.msra.mxu0 0
  %402 = vmatprep.mubr.bf16.mxu0 0
  %403 = vmatmul.mubr.bf16.gmra.mxu0 %v356
  %v404 = vpop.f32.mrf.mxu0
  %v405 = vadd.f32 0.0, %v404
  %v406 = vpop.f32.mrf.mxu0
  %v407 = vpop.f32.mrf.mxu0
  %v408 = vadd.f32 0.0, %v407
  %v409 = vpop.f32.mrf.mxu0
  %410 = vmatprep.mubr.bf16.mxu0 0
  %411 = vmatmul.mubr.bf16.gmra.mxu0 %v359
  %v412 = vpop.f32.mrf.mxu0
  %v413 = vadd.f32 0.0, %v412
  %v414 = vpop.f32.mrf.mxu0
  %v415 = vpop.f32.mrf.mxu0
  %v416 = vadd.f32 0.0, %v415
  %v417 = vpop.f32.mrf.mxu0
  %418 = vmatprep.mubr.bf16.mxu0 0
  %419 = vmatmul.mubr.bf16.gmra.mxu0 %v362
  %v420 = vpop.f32.mrf.mxu0
  %v421 = vadd.f32 0.0, %v420
  %v422 = vpop.f32.mrf.mxu0
  %v423 = vpop.f32.mrf.mxu0
  %v424 = vadd.f32 0.0, %v423
  %v425 = vpop.f32.mrf.mxu0
  %426 = vmatprep.mubr.bf16.mxu0 0
  %427 = vmatmul.mubr.bf16.gmra.mxu0 %v365
  %v428 = vpop.f32.mrf.mxu0
  %v429 = vadd.f32 0.0, %v428
  %v430 = vpop.f32.mrf.mxu0
  %v431 = vpop.f32.mrf.mxu0
  %v432 = vadd.f32 0.0, %v431
  %v433 = vpop.f32.mrf.mxu0
  %434 = vmatprep.mubr.bf16.mxu0 0
  %435 = vmatmul.mubr.bf16.gmra.mxu0 %v368
  %v436 = vpop.f32.mrf.mxu0
  %v437 = vadd.f32 0.0, %v436
  %v438 = vpop.f32.mrf.mxu0
  %v439 = vpop.f32.mrf.mxu0
  %v440 = vadd.f32 0.0, %v439
  %v441 = vpop.f32.mrf.mxu0
  %442 = vdwg.mxu0
  %s443 = scalar_lea.vmem %s0, 120
  %v444 = vld [vmem:[%s443] sm:$0xf]
  %v445 = vld [vmem:[%s443 + $0x4] sm:$0xf]
  %v446 = vld [vmem:[%s443 + $0x8] sm:$0xf]
  %v447 = vld [vmem:[%s443 + $0xc] sm:$0xf]
  %v448 = vld [vmem:[%s443 + $0x10] sm:$0xf]
  %v449 = vld [vmem:[%s443 + $0x14] sm:$0xf]
  %v450 = vld [vmem:[%s443 + $0x18] sm:$0xf]
  %v451 = vld [vmem:[%s443 + $0x1c] sm:$0xf]
  %v452 = vld [vmem:[%s443 + $0x20] sm:$0xf]
  %v453 = vld [vmem:[%s443 + $0x24] sm:$0xf]
  %v464 = vunpack.c.l.b16 %v444
  %v465 = vunpack.c.l.b16 %v445
  %v466 = vunpack.c.l.b16 %v446
  %v467 = vunpack.c.l.b16 %v447
  %v468 = vunpack.c.l.b16 %v448
  %v469 = vunpack.c.l.b16 %v449
  %v470 = vunpack.c.l.b16 %v450
  %v471 = vunpack.c.l.b16 %v451
  %v472 = vunpack.c.l.b16 %v452
  %v473 = vunpack.c.l.b16 %v453
  %v474 = vpack.c.b16 %v465, %v464
  %v475 = vpack.c.b16 %v467, %v466
  %v476 = vpack.c.b16 %v469, %v468
  %v477 = vpack.c.b16 %v471, %v470
  %v478 = vpack.c.b16 %v473, %v472
  %v480 = vsel %vm102, %v474, 0
  %v483 = vsel %vm102, %v475, 0
  %v486 = vsel %vm102, %v476, 0
  %v489 = vsel %vm102, %v477, 0
  %v492 = vsel %vm102, %v478, 0
  %494 = vmatprep.subr.bf16.mxu0 0
  %495 = vmatpush1.bf16.msra.mxu0 0
  %496 = vmatprep.subr.bf16.mxu0 0
  %497 = vmatpush1.bf16.msra.mxu0 %v120
  %498 = vmatprep.subr.bf16.mxu0 0
  %499 = vmatpush1.bf16.msra.mxu0 %v94
  %500 = vmatprep.subr.bf16.mxu0 0
  %501 = vmatpush1.bf16.msra.mxu0 %v93
  %502 = vmatprep.subr.bf16.mxu0 0
  %503 = vmatpush1.bf16.msra.mxu0 %v92
  %504 = vmatprep.subr.bf16.mxu0 0
  %505 = vmatpush1.bf16.msra.mxu0 %v91
  %506 = vmatprep.subr.bf16.mxu0 0
  %507 = vmatpush1.bf16.msra.mxu0 %v90
  %508 = vmatprep.subr.bf16.mxu0 0
  %509 = vmatpush1.bf16.msra.mxu0 %v89
  %510 = vmatprep.subr.bf16.mxu0 0
  %511 = vmatpush2.bf16.msra.mxu0 0
  %512 = vmatprep.subr.bf16.mxu0 0
  %513 = vmatpush2.bf16.msra.mxu0 0
  %514 = vmatprep.subr.bf16.mxu0 0
  %515 = vmatpush2.bf16.msra.mxu0 0
  %516 = vmatprep.subr.bf16.mxu0 0
  %517 = vmatpush2.bf16.msra.mxu0 0
  %518 = vmatprep.subr.bf16.mxu0 0
  %519 = vmatpush2.bf16.msra.mxu0 0
  %520 = vmatprep.subr.bf16.mxu0 0
  %521 = vmatpush2.bf16.msra.mxu0 0
  %522 = vmatprep.subr.bf16.mxu0 0
  %523 = vmatpush2.bf16.msra.mxu0 0
  %524 = vmatprep.subr.bf16.mxu0 0
  %525 = vmatpush2.bf16.msra.mxu0 0
  %526 = vmatprep.mubr.bf16.mxu0 0
  %527 = vmatmul.mubr.bf16.gmra.mxu0 %v480
  %v528 = vpop.f32.mrf.mxu0
  %v529 = vadd.f32 0.0, %v528
  %v530 = vpop.f32.mrf.mxu0
  %v531 = vpop.f32.mrf.mxu0
  %v532 = vadd.f32 0.0, %v531
  %v533 = vpop.f32.mrf.mxu0
  %534 = vmatprep.mubr.bf16.mxu0 0
  %535 = vmatmul.mubr.bf16.gmra.mxu0 %v483
  %v536 = vpop.f32.mrf.mxu0
  %v537 = vadd.f32 0.0, %v536
  %v538 = vpop.f32.mrf.mxu0
  %v539 = vpop.f32.mrf.mxu0
  %v540 = vadd.f32 0.0, %v539
  %v541 = vpop.f32.mrf.mxu0
  %542 = vmatprep.mubr.bf16.mxu0 0
  %543 = vmatmul.mubr.bf16.gmra.mxu0 %v486
  %v544 = vpop.f32.mrf.mxu0
  %v545 = vadd.f32 0.0, %v544
  %v546 = vpop.f32.mrf.mxu0
  %v547 = vpop.f32.mrf.mxu0
  %v548 = vadd.f32 0.0, %v547
  %v549 = vpop.f32.mrf.mxu0
  %550 = vmatprep.mubr.bf16.mxu0 0
  %551 = vmatmul.mubr.bf16.gmra.mxu0 %v489
  %v552 = vpop.f32.mrf.mxu0
  %v553 = vadd.f32 0.0, %v552
  %v554 = vpop.f32.mrf.mxu0
  %v555 = vpop.f32.mrf.mxu0
  %v556 = vadd.f32 0.0, %v555
  %v557 = vpop.f32.mrf.mxu0
  %558 = vmatprep.mubr.bf16.mxu0 0
  %559 = vmatmul.mubr.bf16.gmra.mxu0 %v492
  %v560 = vpop.f32.mrf.mxu0
  %v561 = vadd.f32 0.0, %v560
  %v562 = vpop.f32.mrf.mxu0
  %v563 = vpop.f32.mrf.mxu0
  %v564 = vadd.f32 0.0, %v563
  %v565 = vpop.f32.mrf.mxu0
  %566 = vdwg.mxu0
  %v567 = vmax.f32 %v157, %v281
  %v568 = vmax.f32 %v160, %v284
  %v569 = vmax.f32 %v165, %v289
  %v570 = vmax.f32 %v168, %v292
  %v571 = vmax.f32 %v173, %v297
  %v572 = vmax.f32 %v176, %v300
  %v573 = vmax.f32 %v181, %v305
  %v574 = vmax.f32 %v184, %v308
  %v575 = vmax.f32 %v189, %v313
  %v576 = vmax.f32 %v192, %v316
  %v577 = vmax.f32 %v405, %v529
  %v578 = vmax.f32 %v408, %v532
  %v579 = vmax.f32 %v413, %v537
  %v580 = vmax.f32 %v416, %v540
  %v581 = vmax.f32 %v421, %v545
  %v582 = vmax.f32 %v424, %v548
  %v583 = vmax.f32 %v429, %v553
  %v584 = vmax.f32 %v432, %v556
  %v585 = vmax.f32 %v437, %v561
  %v586 = vmax.f32 %v440, %v564
  %v587 = vmax.f32 %v567, %v577
  %v588 = vmax.f32 %v568, %v578
  %v589 = vmax.f32 %v569, %v579
  %v590 = vmax.f32 %v570, %v580
  %v591 = vmax.f32 %v571, %v581
  %v592 = vmax.f32 %v572, %v582
  %v593 = vmax.f32 %v573, %v583
  %v594 = vmax.f32 %v574, %v584
  %v595 = vmax.f32 %v575, %v585
  %v596 = vmax.f32 %v576, %v586
  %v597 = vld [vmem:[%s2] sm:$0x1]
  %v599 = vlaneseq
  %v600 = vshrl.u32 %v599, 7
  %v601 = vsub.s32 0, %v600
  %v602 = vrot.slane %v597, %v601
  %v604 = vadd.f32 %v587, %v602
  %v605 = vadd.f32 %v588, %v602
  %v606 = vadd.f32 %v589, %v602
  %v607 = vadd.f32 %v590, %v602
  %v608 = vadd.f32 %v591, %v602
  %v609 = vadd.f32 %v592, %v602
  %v610 = vadd.f32 %v593, %v602
  %v611 = vadd.f32 %v594, %v602
  %v612 = vadd.f32 %v595, %v602
  %v613 = vadd.f32 %v596, %v602
  %v614 = vmax.f32 %v604, 0.0
  %v615 = vmax.f32 %v605, 0.0
  %v616 = vmax.f32 %v606, 0.0
  %v617 = vmax.f32 %v607, 0.0
  %v618 = vmax.f32 %v608, 0.0
  %v619 = vmax.f32 %v609, 0.0
  %v620 = vmax.f32 %v610, 0.0
  %v621 = vmax.f32 %v611, 0.0
  %v622 = vmax.f32 %v612, 0.0
  %v623 = vmax.f32 %v613, 0.0
  %624 = vst [vmem:[%s3] sm:$0xff] %v614
  %625 = vst [vmem:[%s3 + $0x8] sm:$0xff] %v615
  %626 = vst [vmem:[%s3 + $0x10] sm:$0xff] %v616
  %627 = vst [vmem:[%s3 + $0x18] sm:$0xff] %v617
  %628 = vst [vmem:[%s3 + $0x20] sm:$0xff] %v618
  %629 = vst [vmem:[%s3 + $0x28] sm:$0xff] %v619
  %630 = vst [vmem:[%s3 + $0x30] sm:$0xff] %v620
  %631 = vst [vmem:[%s3 + $0x38] sm:$0xff] %v621
  %632 = vst [vmem:[%s3 + $0x40] sm:$0xff] %v622
  %633 = vst [vmem:[%s3 + $0x48] sm:$0xff] %v623
  // Predicated region
  $region14: #{cnet_forward.1} parent=0 // pred_check
    _
  $region15: #{cnet_forward.1} parent=0 // pred_check_branch
    %635 = sbr.rel (0) target = $region17
  $region16: #{cnet_forward.1} parent=0 // pred_region
    _
  $region17: #{cnet_forward.1} parent=0 // pred_fallthru
    _
  // Predicated region
  $region18: #{cnet_forward.1} parent=0 // pred_check
    _
  $region19: #{cnet_forward.1} parent=0 // pred_check_branch
    %637 = sbr.rel (0) target = $region21
  $region20: #{cnet_forward.1} parent=0 // pred_region
    _
  $region21: #{cnet_forward.1} parent=0 // pred_fallthru
    _

</llo_original>
